<compile_context>
chip_gen: v5e
topology: v5e:2x2
jax: 0.10.0
libtpu: 0.0.40
codegen_flags: <defaults>
</compile_context>

<pallas_src>
import functools

import jax
import jax.numpy as jnp
from jax.experimental import pallas as pl
from jax.experimental.pallas import tpu as pltpu

LANES = 128  # output / hidden lane width (lane-dense stores)


def _round_up(n, m):
    return ((n + m - 1) // m) * m


def pack_params(params, feature_dim):
    """Pack all weights/biases into ONE (FP+24, 128) f32 slab. Call once at init.

    Layout (FP = feature_dim rounded up to 8):
      rows [0, FP)        : fused first weight  W_a  (lane 0 = w_pi, lanes 1..4 = w1)
      rows [FP, FP+8)     : W2  (row 0 zero for the pi lane, rows 1..4 = w2 -> lanes 0..1)
      rows [FP+8, FP+16)  : W3  (rows 0..1 = w3 -> lane 1)
      row  FP+16          : b_a (lane 0 = 0 [pi has no bias], lanes 1..4 = b1)
      row  FP+17          : b2  (lanes 0..1)
      row  FP+18          : b3  (lane 1)
      remaining rows      : zero padding
    """
    fp = _round_up(max(int(feature_dim), 1), 8)

    w_pi = jnp.asarray(params["w_pi"], jnp.float32)  # (F, 1)
    w1 = jnp.asarray(params["w1"], jnp.float32)      # (F, 4)
    w2 = jnp.asarray(params["w2"], jnp.float32)      # (4, 2)
    w3 = jnp.asarray(params["w3"], jnp.float32)      # (2, 1)
    b1 = jnp.asarray(params["b1"], jnp.float32)      # (4,)
    b2 = jnp.asarray(params["b2"], jnp.float32)      # (2,)
    b3 = jnp.asarray(params["b3"], jnp.float32)      # (1,)

    p = jnp.zeros((fp + 24, LANES), jnp.float32)
    p = p.at[:feature_dim, 0:1].set(w_pi)            # policy head -> lane 0
    p = p.at[:feature_dim, 1:5].set(w1)              # value hidden 1 -> lanes 1..4
    p = p.at[fp + 1:fp + 5, 0:2].set(w2)             # shifted by 1: row 0 kills relu(pi)
    p = p.at[fp + 8:fp + 10, 1:2].set(w3)            # vf lands in lane 1
    p = p.at[fp + 16, 1:5].set(b1)
    p = p.at[fp + 17, 0:2].set(b2)
    p = p.at[fp + 18, 1:2].set(b3)
    return p


def _extractor_kernel(fp, x_ref, p_ref, out_ref):
    x = x_ref[...]                                   # (tb, fp)

    w_a = p_ref[0:fp, :]                             # (fp, 128)  fused [pi | h1]
    w2 = p_ref[fp:fp + 8, :]                         # (8, 128)
    w3 = p_ref[fp + 8:fp + 16, :]                    # (8, 128)
    b_a = p_ref[fp + 16:fp + 17, :]                  # (1, 128)
    b2 = p_ref[fp + 17:fp + 18, :]
    b3 = p_ref[fp + 18:fp + 19, :]

    # Fused first matmul: lane 0 = pi (no bias, no relu), lanes 1..4 = pre-act h1.
    h_a = jnp.dot(x, w_a, preferred_element_type=jnp.float32) + b_a   # (tb, 128)
    lane = jax.lax.broadcasted_iota(jnp.int32, h_a.shape, 1)
    pi_only = jnp.where(lane == 0, h_a, 0.0)         # pi isolated in lane 0

    h1 = jnp.maximum(h_a, 0.0)
    # W2 row 0 is zero, so relu(pi) in lane 0 contributes nothing.
    h2 = jnp.dot(h1[:, :8], w2, preferred_element_type=jnp.float32) + b2
    h2 = jnp.maximum(h2, 0.0)
    vf = jnp.dot(h2[:, :8], w3, preferred_element_type=jnp.float32) + b3  # lane 1

    out_ref[...] = pi_only + vf                      # lane 0 = pi, lane 1 = vf


@functools.partial(jax.jit, static_argnames=("block_rows",))
def custom_extractor_forward(x, packed_params, *, block_rows=512):
    """x: [B, feature_dim] -> (latent_pi [B,1], latent_vf [B,1])."""
    B, F = x.shape
    fp = packed_params.shape[0] - 24                 # static at trace time
    assert F <= fp, "feature_dim exceeds packed parameter padding"

    tb = min(block_rows, _round_up(B, 8))            # batch tile (sublane aligned)
    Bp = _round_up(B, tb)

    # Only the activations are padded per call: (Bp, fp) — a few KiB, not 128 lanes.
    xp = jnp.zeros((Bp, fp), jnp.float32).at[:B, :F].set(x.astype(jnp.float32))

    out = pl.pallas_call(
        functools.partial(_extractor_kernel, fp),
        out_shape=jax.ShapeDtypeStruct((Bp, LANES), jnp.float32),
        grid=(Bp // tb,),
        in_specs=[
            pl.BlockSpec((tb, fp), lambda i: (i, 0)),                 # x tiles
            pl.BlockSpec((fp + 24, LANES), lambda i: (0, 0)),         # params resident
        ],
        out_specs=pl.BlockSpec((tb, LANES), lambda i: (i, 0)),        # lane-dense out
        compiler_params=pltpu.CompilerParams(
            dimension_semantics=("parallel",)),                       # 2 TCs on v7x
    )(xp, packed_params)

    latent_pi = out[:B, 0:1]
    latent_vf = out[:B, 1:2]
    return latent_pi, latent_vf


def _init_params(key, feature_dim=2):
    """Deterministic synthetic init matching nn.Linear shapes (stored as [in, out])."""
    ks = jax.random.split(key, 7)
    scale = 0.5
    return {
        # policy_net: Linear(feature_dim, 1, bias=False)
        "w_pi": scale * jax.random.normal(ks[0], (feature_dim, 1), jnp.float32),
        # value_net: Linear(feature_dim, 4) -> ReLU -> Linear(4, 2) -> ReLU -> Linear(2, 1)
        "w1": scale * jax.random.normal(ks[1], (feature_dim, 4), jnp.float32),
        "b1": scale * jax.random.normal(ks[2], (4,), jnp.float32),
        "w2": scale * jax.random.normal(ks[3], (4, 2), jnp.float32),
        "b2": scale * jax.random.normal(ks[4], (2,), jnp.float32),
        "w3": scale * jax.random.normal(ks[5], (2, 1), jnp.float32),
        "b3": scale * jax.random.normal(ks[6], (1,), jnp.float32),
    }


def _reference_forward(x, p):
    pi = x @ p["w_pi"]
    h1 = jnp.maximum(x @ p["w1"] + p["b1"], 0.0)
    h2 = jnp.maximum(h1 @ p["w2"] + p["b2"], 0.0)
    vf = h2 @ p["w3"] + p["b3"]
    return pi, vf


if __name__ == "__main__":
    key = jax.random.PRNGKey(0)
    k_x, k_p = jax.random.split(key)

    batch, feature_dim = 8, 2
    x = jax.random.normal(k_x, (batch, feature_dim), jnp.float32)
    params = _init_params(k_p, feature_dim)

    # Pack static parameters ONCE (would live with the module, not per forward).
    packed = jax.block_until_ready(pack_params(params, feature_dim))

    latent_pi, latent_vf = custom_extractor_forward(x, packed)
    jax.block_until_ready((latent_pi, latent_vf))

    ref_pi, ref_vf = _reference_forward(x, params)
    assert latent_pi.shape == (batch, 1) and latent_vf.shape == (batch, 1)
    assert jnp.allclose(latent_pi, ref_pi, atol=1e-5, rtol=1e-5)
    assert jnp.allclose(latent_vf, ref_vf, atol=1e-5, rtol=1e-5)

    print("KERNEL_OK")
</pallas_src>

<mosaic_0001>
module attributes {stable_mosaic.version = 11 : i64} {
  func.func @_extractor_kernel(%arg0: i32, %arg1: memref<8x8xf32, #tpu.memory_space<vmem>>, %arg2: memref<32x128xf32, #tpu.memory_space<vmem>>, %arg3: memref<8x128xf32, #tpu.memory_space<vmem>>) attributes {dimension_semantics = [#tpu.dimension_semantics<parallel>], iteration_bounds = array<i64: 1>, scalar_prefetch = 0 : i64, scratch_operands = 0 : i64, tpu.core_type = #tpu.core_type<tc>, window_params = [{transform_indices = @transform_0, window_bounds = array<i64: 8, 8>}, {pipeline_mode = #tpu.pipeline_mode<synchronous>, transform_indices = @transform_1, window_bounds = array<i64: 32, 128>}, {transform_indices = @transform_2, window_bounds = array<i64: 8, 128>}]} {
    %c0 = arith.constant 0 : index
    %c0_0 = arith.constant 0 : index
    %0 = vector.load %arg1[%c0, %c0_0] : memref<8x8xf32, #tpu.memory_space<vmem>>, vector<8x8xf32>
    %c0_1 = arith.constant 0 : index
    %c0_2 = arith.constant 0 : index
    %1 = vector.load %arg2[%c0_1, %c0_2] : memref<32x128xf32, #tpu.memory_space<vmem>>, vector<8x128xf32>
    %c8 = arith.constant 8 : index
    %c0_3 = arith.constant 0 : index
    %2 = vector.load %arg2[%c8, %c0_3] : memref<32x128xf32, #tpu.memory_space<vmem>>, vector<8x128xf32>
    %c16 = arith.constant 16 : index
    %c0_4 = arith.constant 0 : index
    %3 = vector.load %arg2[%c16, %c0_4] : memref<32x128xf32, #tpu.memory_space<vmem>>, vector<8x128xf32>
    %c24 = arith.constant 24 : index
    %c0_5 = arith.constant 0 : index
    %4 = vector.load %arg2[%c24, %c0_5] : memref<32x128xf32, #tpu.memory_space<vmem>>, vector<1x128xf32>
    %c25 = arith.constant 25 : index
    %c0_6 = arith.constant 0 : index
    %5 = vector.load %arg2[%c25, %c0_6] : memref<32x128xf32, #tpu.memory_space<vmem>>, vector<1x128xf32>
    %c26 = arith.constant 26 : index
    %c0_7 = arith.constant 0 : index
    %6 = vector.load %arg2[%c26, %c0_7] : memref<32x128xf32, #tpu.memory_space<vmem>>, vector<1x128xf32>
    %cst = arith.constant dense<0.000000e+00> : vector<8x128xf32>
    %7 = tpu.matmul %0, %1, %cst {dimension_numbers = #tpu.dot_dimension_numbers<[1], [0], [0], [1], [0, 0, 1, 1], [], []>} : vector<8x8xf32>, vector<8x128xf32>, vector<8x128xf32> -> vector<8x128xf32>
    %8 = vector.broadcast %4 : vector<1x128xf32> to vector<8x128xf32>
    %9 = arith.addf %7, %8 : vector<8x128xf32>
    %10 = tpu.iota {dimensions = array<i32: 1>} : vector<8x128xi32>
    %c0_i32 = arith.constant 0 : i32
    %11 = vector.broadcast %c0_i32 : i32 to vector<8x128xi32>
    %12 = arith.cmpi eq, %10, %11 : vector<8x128xi32>
    %cst_8 = arith.constant 0.000000e+00 : f32
    %13 = vector.broadcast %cst_8 : f32 to vector<8x128xf32>
    %14 = arith.select %12, %9, %13 : vector<8x128xi1>, vector<8x128xf32>
    %cst_9 = arith.constant 0.000000e+00 : f32
    %15 = vector.broadcast %cst_9 : f32 to vector<8x128xf32>
    %16 = arith.maximumf %9, %15 : vector<8x128xf32>
    %17 = vector.extract_strided_slice %16 {offsets = [0, 0], sizes = [8, 8], strides = [1, 1]} : vector<8x128xf32> to vector<8x8xf32>
    %cst_10 = arith.constant dense<0.000000e+00> : vector<8x128xf32>
    %18 = tpu.matmul %17, %2, %cst_10 {dimension_numbers = #tpu.dot_dimension_numbers<[1], [0], [0], [1], [0, 0, 1, 1], [], []>} : vector<8x8xf32>, vector<8x128xf32>, vector<8x128xf32> -> vector<8x128xf32>
    %19 = vector.broadcast %5 : vector<1x128xf32> to vector<8x128xf32>
    %20 = arith.addf %18, %19 : vector<8x128xf32>
    %cst_11 = arith.constant 0.000000e+00 : f32
    %21 = vector.broadcast %cst_11 : f32 to vector<8x128xf32>
    %22 = arith.maximumf %20, %21 : vector<8x128xf32>
    %23 = vector.extract_strided_slice %22 {offsets = [0, 0], sizes = [8, 8], strides = [1, 1]} : vector<8x128xf32> to vector<8x8xf32>
    %cst_12 = arith.constant dense<0.000000e+00> : vector<8x128xf32>
    %24 = tpu.matmul %23, %3, %cst_12 {dimension_numbers = #tpu.dot_dimension_numbers<[1], [0], [0], [1], [0, 0, 1, 1], [], []>} : vector<8x8xf32>, vector<8x128xf32>, vector<8x128xf32> -> vector<8x128xf32>
    %25 = vector.broadcast %6 : vector<1x128xf32> to vector<8x128xf32>
    %26 = arith.addf %24, %25 : vector<8x128xf32>
    %27 = arith.addf %14, %26 : vector<8x128xf32>
    %c0_13 = arith.constant 0 : index
    %c0_14 = arith.constant 0 : index
    %28 = vector.load %arg3[%c0_13, %c0_14] : memref<8x128xf32, #tpu.memory_space<vmem>>, vector<8x128xf32>
    tpu.vector_store %arg3[%c0_13, %c0_14], %27 {strides = array<i32>} : memref<8x128xf32, #tpu.memory_space<vmem>>, vector<8x128xf32>,
    return
  }
  func.func @transform_0(%arg0: i32) -> (i32, i32) {
    %c0_i32 = arith.constant 0 : i32
    %c0_i32_0 = arith.constant 0 : i32
    return %arg0, %c0_i32 : i32, i32
  }
  func.func @transform_1(%arg0: i32) -> (i32, i32) {
    %c0_i32 = arith.constant 0 : i32
    %c0_i32_0 = arith.constant 0 : i32
    %c0_i32_1 = arith.constant 0 : i32
    return %c0_i32, %c0_i32_0 : i32, i32
  }
  func.func @transform_2(%arg0: i32) -> (i32, i32) {
    %c0_i32 = arith.constant 0 : i32
    %c0_i32_0 = arith.constant 0 : i32
    return %arg0, %c0_i32 : i32, i32
  }
}

</mosaic_0001>

<llo_original>
// kernel: custom_extractor_forward.1
$region0: #{custom_extractor_forward.1}
  #allocation0 [shape = 'u32[]', space=smem, size = 0x4, offset = 0x4, fixed_abs, tag = 'smem constant byte address 0x4 - core index']
  #allocation1 [shape = 'u32[72,128]{1,0:T(1,128)}', space=vmem, size = 0x9000, scoped, tag = 'internal scratch']
  %s0 = inlined_call_operand.vmem [shape: f32[8,8], index: 0, kind: input, shape index: {}]
  %s1 = inlined_call_operand.vmem [shape: f32[32,128], index: 1, kind: input, shape index: {}]
  %s2 = inlined_call_operand.vmem [shape: f32[8,128], index: 2, kind: output, shape index: {}]
  %s3 = sld [smem:[#allocation0]]
  $region18: #{custom_extractor_forward.1} parent=0
    _
  %s5 = ssub.s32 1, %s3
  %s6 = scalar_select 0, %s5, %s3
  // Predicated region
  $region2: #{custom_extractor_forward.1} parent=0 // pred_check
    _
  $region3: #{custom_extractor_forward.1} parent=0 // pred_check_branch
    %8 = sbr.rel (0) target = $region5
  $region4: #{custom_extractor_forward.1} parent=0 // pred_region
    _
  $region5: #{custom_extractor_forward.1} parent=0 // pred_fallthru
    _
  // Predicated region
  $region6: #{custom_extractor_forward.1} parent=0 // pred_check
    _
  $region7: #{custom_extractor_forward.1} parent=0 // pred_check_branch
    %10 = sbr.rel (0) target = $region9
  $region8: #{custom_extractor_forward.1} parent=0 // pred_region
    _
  $region9: #{custom_extractor_forward.1} parent=0 // pred_fallthru
    _
  %v11 = vld [vmem:[%s0] sm:$0xff]
  %v12 = vld [vmem:[%s1] sm:$0xff]
  %v13 = vld [vmem:[%s1 + $0x8] sm:$0xff]
  %v14 = vld [vmem:[%s1 + $0x10] sm:$0xff]
  %v15 = vld [vmem:[%s1 + $0x18] sm:$0x1]
  %v16 = vld [vmem:[%s1 + $0x19] sm:$0x1]
  %v17 = vld [vmem:[%s1 + $0x1a] sm:$0x1]
  %v18 = vperm.slane %v15, 0
  %vm19 = vcmask 64512
  %v21 = vsel %vm19, %v11, 0
  %23 = vmatpush.msra.mxu0 0.0
  %24 = vmatpush.msra.mxu0 0.0
  %25 = vmatpush.msra.mxu0 0.0
  %26 = vmatpush.msra.mxu0 0.0
  %27 = vmatpush.msra.mxu0 0.0
  %28 = vmatpush.msra.mxu0 0.0
  %29 = vmatpush.msra.mxu0 0.0
  %30 = vmatpush.msra.mxu0 0.0
  %31 = vmatpush.msra.mxu0 0.0
  %32 = vmatpush.msra.mxu0 0.0
  %33 = vmatpush.msra.mxu0 0.0
  %34 = vmatpush.msra.mxu0 0.0
  %35 = vmatpush.msra.mxu0 0.0
  %36 = vmatpush.msra.mxu0 0.0
  %37 = vmatpush.msra.mxu0 0.0
  %38 = vmatpush.msra.mxu0 %v12
  %39 = vmatmul.f32.gmra.mxu0 %v21
  %v40 = vpop.f32.mrf.mxu0
  %v41 = vadd.f32 %v18, %v40
  %42 = vdwg.mxu0
  %v43 = vlaneseq
  %v44 = vand.u32 %v43, 127
  %vm45 = vcmp.eq.s32.totalorder %v44, 0
  %v46 = vsel %vm45, %v41, 0.0
  %v47 = vmax.f32 %v41, 0.0
  %v48 = vperm.slane %v16, 0
  %v50 = vsel %vm19, %v47, 0
  %52 = vmatpush.msra.mxu0 0.0
  %53 = vmatpush.msra.mxu0 0.0
  %54 = vmatpush.msra.mxu0 0.0
  %55 = vmatpush.msra.mxu0 0.0
  %56 = vmatpush.msra.mxu0 0.0
  %57 = vmatpush.msra.mxu0 0.0
  %58 = vmatpush.msra.mxu0 0.0
  %59 = vmatpush.msra.mxu0 0.0
  %60 = vmatpush.msra.mxu0 0.0
  %61 = vmatpush.msra.mxu0 0.0
  %62 = vmatpush.msra.mxu0 0.0
  %63 = vmatpush.msra.mxu0 0.0
  %64 = vmatpush.msra.mxu0 0.0
  %65 = vmatpush.msra.mxu0 0.0
  %66 = vmatpush.msra.mxu0 0.0
  %67 = vmatpush.msra.mxu0 %v13
  %68 = vmatmul.f32.gmra.mxu0 %v50
  %v69 = vpop.f32.mrf.mxu0
  %v70 = vadd.f32 %v48, %v69
  %71 = vdwg.mxu0
  %v72 = vmax.f32 %v70, 0.0
  %v73 = vperm.slane %v17, 0
  %v75 = vsel %vm19, %v72, 0
  %77 = vmatpush.msra.mxu0 0.0
  %78 = vmatpush.msra.mxu0 0.0
  %79 = vmatpush.msra.mxu0 0.0
  %80 = vmatpush.msra.mxu0 0.0
  %81 = vmatpush.msra.mxu0 0.0
  %82 = vmatpush.msra.mxu0 0.0
  %83 = vmatpush.msra.mxu0 0.0
  %84 = vmatpush.msra.mxu0 0.0
  %85 = vmatpush.msra.mxu0 0.0
  %86 = vmatpush.msra.mxu0 0.0
  %87 = vmatpush.msra.mxu0 0.0
  %88 = vmatpush.msra.mxu0 0.0
  %89 = vmatpush.msra.mxu0 0.0
  %90 = vmatpush.msra.mxu0 0.0
  %91 = vmatpush.msra.mxu0 0.0
  %92 = vmatpush.msra.mxu0 %v14
  %93 = vmatmul.f32.gmra.mxu0 %v75
  %v94 = vpop.f32.mrf.mxu0
  %v95 = vadd.f32 %v73, %v94
  %96 = vdwg.mxu0
  %v97 = vadd.f32 %v46, %v95
  %98 = vst [vmem:[%s2] sm:$0xff] %v97
  // Predicated region
  $region10: #{custom_extractor_forward.1} parent=0 // pred_check
    _
  $region11: #{custom_extractor_forward.1} parent=0 // pred_check_branch
    %100 = sbr.rel (0) target = $region13
  $region12: #{custom_extractor_forward.1} parent=0 // pred_region
    _
  $region13: #{custom_extractor_forward.1} parent=0 // pred_fallthru
    _
  // Predicated region
  $region14: #{custom_extractor_forward.1} parent=0 // pred_check
    _
  $region15: #{custom_extractor_forward.1} parent=0 // pred_check_branch
    %102 = sbr.rel (0) target = $region17
  $region16: #{custom_extractor_forward.1} parent=0 // pred_region
    _
  $region17: #{custom_extractor_forward.1} parent=0 // pred_fallthru
    _

</llo_original>
